<compile_context>
chip_gen: v7x
topology: tpu7x:2x2x1
jax: 0.10.0
libtpu: 0.0.40
codegen_flags: <defaults>
</compile_context>

<pallas_src>
import functools
import math

import jax
import jax.numpy as jnp
from jax.experimental import pallas as pl
from jax.experimental.pallas import tpu as pltpu

BN_EPS = 1e-5                         # PyTorch nn.BatchNorm1d default
NEG_INF = -1e30                       # padded logit bias (exp underflows to 0)
MAX_TILE_B = 1024                     # default batch-tile cap (grid-overhead amortization)
H_CACHE_BUDGET = 12 * 1024 * 1024     # max bytes of cached h activations in VMEM
VMEM_LIMIT_BYTES = 40 * 1024 * 1024   # explicit scoped-VMEM limit (v5e default is only 16 MiB)


def _round_up(n, m):
    return ((n + m - 1) // m) * m


def _bn_scale_shift(sum_vec, sq_vec, gamma, beta, batch_size):
    """Training-mode BatchNorm scale/shift from accumulated sum / sum-of-squares.

    Variance via E[h^2] - mean^2: one accumulation sweep; assumes per-feature
    |mean| is not >> std (holds for kaiming-random weights / centered inputs).
    """
    inv_b = 1.0 / batch_size
    mean = sum_vec * inv_b
    var = sq_vec * inv_b - mean * mean           # biased variance (training BN)
    scale = jax.lax.rsqrt(var + BN_EPS) * gamma
    shift = beta - mean * scale
    return scale, shift


def _normalize_classify(h, scale, shift, w2, b2, out_ref):
    """Fused BN affine + ReLU + Linear(512->s_pad) + log_softmax; store to out_ref."""
    y = jnp.maximum(h * scale + shift, 0.0)
    # bf16 MXU operands, f32 accumulation.  Padded output columns carry a -1e30
    # bias so the max / exp / LSE below ignore them exactly.
    logits = jnp.dot(y.astype(jnp.bfloat16), w2,
                     preferred_element_type=jnp.float32) + b2
    m = jnp.max(logits, axis=-1, keepdims=True)
    shifted = logits - m
    lse = jnp.log(jnp.sum(jnp.exp(shifted), axis=-1, keepdims=True))
    out_ref[...] = (shifted - lse).astype(out_ref.dtype)


def spk_single_tile_kernel(x_ref, w1_ref, gamma_ref, beta_ref, w2_ref, b2_ref,
                           out_ref, *, batch_size):
    """Fast path: whole (padded) batch is one tile -> one grid step, one GEMM."""
    # Linear(256->512): bf16 operands, f32 accumulation.  The Linear bias is
    # intentionally omitted: training-mode BatchNorm's batch-mean subtraction
    # cancels any per-feature constant exactly.
    h = jnp.dot(x_ref[...], w1_ref[...], preferred_element_type=jnp.float32)
    # Padded batch rows are all-zero (and there is no bias) => contribute 0 to
    # both statistics; divide by the true batch size.
    s = jnp.sum(h, axis=0, keepdims=True)
    sq = jnp.sum(h * h, axis=0, keepdims=True)
    scale, shift = _bn_scale_shift(s, sq, gamma_ref[...], beta_ref[...], batch_size)
    _normalize_classify(h, scale, shift, w2_ref[...], b2_ref[...], out_ref)


def spk_two_phase_kernel(x_ref, w1_ref, gamma_ref, beta_ref, w2_ref, b2_ref,
                         out_ref, h_cache_ref, sum_ref, sq_ref,
                         *, batch_size, cache_h):
    """grid = (phase, batch_tile); full-batch exact BN statistics.

    phase 0: GEMM1 per tile, cache h (VMEM), accumulate per-feature sum / sumsq.
    phase 1: finalize BN scale/shift once (tile 0), then normalize + ReLU +
             GEMM2 + log_softmax per tile, reading h from the VMEM cache (no
             duplicate GEMM1, no x re-streaming).
    """
    phase = pl.program_id(0)
    tile = pl.program_id(1)

    @pl.when(phase == 0)
    def _stats_pass():
        @pl.when(tile == 0)
        def _init():
            sum_ref[...] = jnp.zeros_like(sum_ref)
            sq_ref[...] = jnp.zeros_like(sq_ref)

        h = jnp.dot(x_ref[...], w1_ref[...], preferred_element_type=jnp.float32)
        if cache_h:
            # Persist activations so phase 1 does not redo the dominant GEMM.
            h_cache_ref[tile] = h
        # Zero padded batch rows contribute exactly 0 to both accumulators.
        sum_ref[...] += jnp.sum(h, axis=0, keepdims=True)
        sq_ref[...] += jnp.sum(h * h, axis=0, keepdims=True)

    @pl.when(phase == 1)
    def _classify_pass():
        @pl.when(tile == 0)
        def _finalize():
            scale, shift = _bn_scale_shift(sum_ref[...], sq_ref[...],
                                           gamma_ref[...], beta_ref[...],
                                           batch_size)
            sum_ref[...] = scale        # reuse scratch: sum  <- scale
            sq_ref[...] = shift         #                sumsq<- shift

        if cache_h:
            h = h_cache_ref[tile]
        else:
            # Fallback (cache did not fit the VMEM budget): recompute GEMM1.
            h = jnp.dot(x_ref[...], w1_ref[...], preferred_element_type=jnp.float32)
        _normalize_classify(h, sum_ref[...], sq_ref[...],
                            w2_ref[...], b2_ref[...], out_ref)


def spk_classifier_forward(x, params, *, tile_b=None, use_h_cache=None):
    """x: [B, 256] float32.  Returns log-probs [B, spk_num] float32."""
    w1 = params["w1"]          # [256, 512]   bf16
    gamma = params["gamma"]    # [1, 512]     f32
    beta = params["beta"]      # [1, 512]     f32
    w2 = params["w2_pad"]      # [512, S_pad] bf16
    b2 = params["b2_pad"]      # [1, S_pad]   f32
    spk_num = params["spk_num"]

    B = x.shape[0]
    in_dim = x.shape[1]
    hid = w1.shape[1]
    s_pad = w2.shape[1]

    # Batch tile: multiple of 16 (bf16 sublane packing).  Default: the whole
    # batch up to 1024 rows (amortizes per-grid-step overhead; footprint stays
    # well inside the explicit 40 MiB VMEM limit on every generation).
    if tile_b is None:
        tile_b = min(_round_up(B, 16), MAX_TILE_B)
    else:
        tile_b = max(16, _round_up(tile_b, 16))
    b_pad = _round_up(B, tile_b)
    num_tiles = b_pad // tile_b

    # Single bf16 cast of the activations (MXU operand); zero-pad ragged batch.
    x_bf16 = x.astype(jnp.bfloat16)
    if b_pad != B:
        x_bf16 = jnp.pad(x_bf16, ((0, b_pad - B), (0, 0)))

    compiler_params_1d = pltpu.CompilerParams(
        dimension_semantics=("arbitrary",),
        vmem_limit_bytes=VMEM_LIMIT_BYTES,
    )
    compiler_params_2d = pltpu.CompilerParams(
        # Batch axis is coupled through the BN statistics (and the h cache), so
        # it must stay sequential; the phase axis is inherently sequential.
        dimension_semantics=("arbitrary", "arbitrary"),
        vmem_limit_bytes=VMEM_LIMIT_BYTES,
    )

    if num_tiles == 1:
        # ---- Single-pass fast path: whole batch in one tile ----
        kernel = functools.partial(spk_single_tile_kernel, batch_size=B)
        out = pl.pallas_call(
            kernel,
            out_shape=jax.ShapeDtypeStruct((b_pad, s_pad), jnp.float32),
            grid=(1,),
            in_specs=[
                pl.BlockSpec((b_pad, in_dim), lambda i: (0, 0)),   # x (whole batch)
                pl.BlockSpec(w1.shape, lambda i: (0, 0)),          # w1 (resident)
                pl.BlockSpec(gamma.shape, lambda i: (0, 0)),       # gamma
                pl.BlockSpec(beta.shape, lambda i: (0, 0)),        # beta
                pl.BlockSpec(w2.shape, lambda i: (0, 0)),          # w2
                pl.BlockSpec(b2.shape, lambda i: (0, 0)),          # b2
            ],
            out_specs=pl.BlockSpec((b_pad, s_pad), lambda i: (0, 0)),
            compiler_params=compiler_params_1d,
        )(x_bf16, w1, gamma, beta, w2, b2)
        return out[:B, :spk_num]

    # ---- Two-phase path: exact full-batch BN statistics over tiled batch ----
    cache_bytes = num_tiles * tile_b * hid * 4          # f32 cache (numerics-safe)
    cache_h = cache_bytes <= H_CACHE_BUDGET
    if use_h_cache is not None:
        cache_h = bool(use_h_cache)
    cache_shape = (num_tiles, tile_b, hid) if cache_h else (1, 8, hid)  # dummy if unused

    if cache_h:
        # Pin x to the last phase-0 tile during phase 1: the block index never
        # changes in phase 1, so x is not re-DMA'd (it is not read either).
        x_index_map = lambda p, t: ((1 - p) * t + p * (num_tiles - 1), 0)
    else:
        # Recompute fallback needs the real x tile in both phases.
        x_index_map = lambda p, t: (t, 0)

    kernel = functools.partial(spk_two_phase_kernel, batch_size=B, cache_h=cache_h)

    out = pl.pallas_call(
        kernel,
        out_shape=jax.ShapeDtypeStruct((b_pad, s_pad), jnp.float32),
        grid=(2, num_tiles),   # (phase, batch tile); batch tile is innermost
        in_specs=[
            pl.BlockSpec((tile_b, in_dim), x_index_map),       # x tile
            pl.BlockSpec(w1.shape, lambda p, t: (0, 0)),       # w1 (resident)
            pl.BlockSpec(gamma.shape, lambda p, t: (0, 0)),    # gamma (resident)
            pl.BlockSpec(beta.shape, lambda p, t: (0, 0)),     # beta (resident)
            pl.BlockSpec(w2.shape, lambda p, t: (0, 0)),       # w2 (resident)
            pl.BlockSpec(b2.shape, lambda p, t: (0, 0)),       # b2 (resident)
        ],
        # NOTE (do not change): p*t keeps the output block index pinned to 0 for
        # the whole stats phase so the never-written output buffer is not flushed
        # to HBM; only phase 1 (index t) writes real data back.
        out_specs=pl.BlockSpec((tile_b, s_pad), lambda p, t: (p * t, 0)),
        scratch_shapes=[
            pltpu.VMEM(cache_shape, jnp.float32),   # per-tile h cache (phase 0 -> 1)
            pltpu.VMEM((1, hid), jnp.float32),      # sum   -> later reused as scale
            pltpu.VMEM((1, hid), jnp.float32),      # sumsq -> later reused as shift
        ],
        compiler_params=compiler_params_2d,
    )(x_bf16, w1, gamma, beta, w2, b2)

    return out[:B, :spk_num]


def init_params(key, spk_num):
    """Synthetic init mimicking the PyTorch module:
    Linear weights ~ kaiming_normal(mode='fan_out', relu): std = sqrt(2/fan_out);
    Linear biases ~ PyTorch default U(-1/sqrt(fan_in), 1/sqrt(fan_in));
    BatchNorm gamma = 1, beta = 0.
    Weights are stored transposed ([in, out]) and in bf16 (MXU operands);
    the output projection is padded to a multiple of 128 columns (lane-dense)."""
    k1, k2, k3, k4 = jax.random.split(key, 4)
    in1, out1 = 256, 512
    in2 = 512
    s_pad = max(128, _round_up(spk_num, 128))

    w1 = (jax.random.normal(k1, (in1, out1), jnp.float32)
          * math.sqrt(2.0 / out1)).astype(jnp.bfloat16)
    # b1 is kept only for the pure-JAX reference; the kernel drops it because
    # training-mode BatchNorm's mean subtraction cancels it exactly.
    b1 = jax.random.uniform(k2, (1, out1), jnp.float32,
                            minval=-1.0 / math.sqrt(in1), maxval=1.0 / math.sqrt(in1))
    gamma = jnp.ones((1, out1), jnp.float32)
    beta = jnp.zeros((1, out1), jnp.float32)

    w2 = jax.random.normal(k3, (in2, spk_num), jnp.float32) * math.sqrt(2.0 / spk_num)
    b2 = jax.random.uniform(k4, (1, spk_num), jnp.float32,
                            minval=-1.0 / math.sqrt(in2), maxval=1.0 / math.sqrt(in2))

    # Lane-dense padding: zero weight columns + NEG_INF bias columns keep
    # log_softmax over the real spk_num columns exact.
    w2_pad = jnp.zeros((in2, s_pad), jnp.float32).at[:, :spk_num].set(w2).astype(jnp.bfloat16)
    b2_pad = jnp.full((1, s_pad), NEG_INF, jnp.float32).at[:, :spk_num].set(b2)

    return {"w1": w1, "b1": b1, "gamma": gamma, "beta": beta,
            "w2_pad": w2_pad, "b2_pad": b2_pad, "spk_num": spk_num}


def reference_forward(x, params):
    """Pure-JAX reference of the PyTorch module semantics (Linear bias included),
    using the same bf16-quantized MXU operands as the kernel."""
    spk = params["spk_num"]
    x32 = x.astype(jnp.bfloat16).astype(jnp.float32)
    w1 = params["w1"].astype(jnp.float32)
    h = x32 @ w1 + params["b1"]
    mean = jnp.mean(h, axis=0, keepdims=True)
    var = jnp.mean((h - mean) ** 2, axis=0, keepdims=True)   # biased (training BN)
    h = (h - mean) / jnp.sqrt(var + BN_EPS) * params["gamma"] + params["beta"]
    h = jnp.maximum(h, 0.0)
    w2 = params["w2_pad"][:, :spk].astype(jnp.float32)
    b2 = params["b2_pad"][:, :spk]
    logits = h.astype(jnp.bfloat16).astype(jnp.float32) @ w2 + b2
    return jax.nn.log_softmax(logits, axis=-1)


if __name__ == "__main__":
    key = jax.random.PRNGKey(0)
    k_x1, k_x2, k_p = jax.random.split(key, 3)

    SPK_NUM = 16
    params = init_params(k_p, SPK_NUM)

    # Case 1: small batch -> single-pass fast path (one tile, one grid step).
    B1 = 16
    x1 = jax.random.normal(k_x1, (B1, 256), jnp.float32)
    out1 = jax.block_until_ready(spk_classifier_forward(x1, params))
    ref1 = reference_forward(x1, params)
    assert out1.shape == (B1, SPK_NUM)
    # Tolerance accounts for bf16 MXU operands (accumulation stays f32).
    assert jnp.allclose(out1, ref1, atol=5e-3), float(jnp.max(jnp.abs(out1 - ref1)))
    assert jnp.allclose(jnp.sum(jnp.exp(out1), axis=-1), 1.0, atol=1e-4)

    # Case 2: multi-tile batch with a ragged last tile -> two-phase path with the
    # VMEM h cache (full-batch exact BatchNorm statistics, GEMM1 computed once).
    B2 = 40
    x2 = jax.random.normal(k_x2, (B2, 256), jnp.float32)
    out2 = jax.block_until_ready(spk_classifier_forward(x2, params, tile_b=16))
    ref2 = reference_forward(x2, params)
    assert out2.shape == (B2, SPK_NUM)
    assert jnp.allclose(out2, ref2, atol=5e-3), float(jnp.max(jnp.abs(out2 - ref2)))
    assert jnp.allclose(jnp.sum(jnp.exp(out2), axis=-1), 1.0, atol=1e-4)

    # Case 3: same batch, forcing the no-cache recompute fallback (exercises the
    # code path used when the h cache would exceed the VMEM budget).
    out3 = jax.block_until_ready(
        spk_classifier_forward(x2, params, tile_b=16, use_h_cache=False))
    assert jnp.allclose(out3, ref2, atol=5e-3), float(jnp.max(jnp.abs(out3 - ref2)))

    print("KERNEL_OK")
</pallas_src>

<mosaic_0001>
module attributes {stable_mosaic.version = 11 : i64} {
  func.func @spk_single_tile_kernel(%arg0: i32, %arg1: memref<16x256xbf16, #tpu.memory_space<vmem>>, %arg2: memref<256x512xbf16, #tpu.memory_space<vmem>>, %arg3: memref<1x512xf32, #tpu.memory_space<vmem>>, %arg4: memref<1x512xf32, #tpu.memory_space<vmem>>, %arg5: memref<512x128xbf16, #tpu.memory_space<vmem>>, %arg6: memref<1x128xf32, #tpu.memory_space<vmem>>, %arg7: memref<16x128xf32, #tpu.memory_space<vmem>>) attributes {dimension_semantics = [#tpu.dimension_semantics<arbitrary>], iteration_bounds = array<i64: 1>, scalar_prefetch = 0 : i64, scratch_operands = 0 : i64, tpu.core_type = #tpu.core_type<tc>, window_params = [{pipeline_mode = #tpu.pipeline_mode<synchronous>, transform_indices = @transform_0, window_bounds = array<i64: 16, 256>}, {pipeline_mode = #tpu.pipeline_mode<synchronous>, transform_indices = @transform_1, window_bounds = array<i64: 256, 512>}, {pipeline_mode = #tpu.pipeline_mode<synchronous>, transform_indices = @transform_2, window_bounds = array<i64: 1, 512>}, {pipeline_mode = #tpu.pipeline_mode<synchronous>, transform_indices = @transform_3, window_bounds = array<i64: 1, 512>}, {pipeline_mode = #tpu.pipeline_mode<synchronous>, transform_indices = @transform_4, window_bounds = array<i64: 512, 128>}, {pipeline_mode = #tpu.pipeline_mode<synchronous>, transform_indices = @transform_5, window_bounds = array<i64: 1, 128>}, {pipeline_mode = #tpu.pipeline_mode<synchronous>, transform_indices = @transform_6, window_bounds = array<i64: 16, 128>}]} {
    %c0 = arith.constant 0 : index
    %c0_0 = arith.constant 0 : index
    %0 = vector.load %arg1[%c0, %c0_0] : memref<16x256xbf16, #tpu.memory_space<vmem>>, vector<16x256xbf16>
    %c0_1 = arith.constant 0 : index
    %c0_2 = arith.constant 0 : index
    %1 = vector.load %arg2[%c0_1, %c0_2] : memref<256x512xbf16, #tpu.memory_space<vmem>>, vector<256x512xbf16>
    %cst = arith.constant dense<0.000000e+00> : vector<16x512xf32>
    %2 = tpu.matmul %0, %1, %cst {dimension_numbers = #tpu.dot_dimension_numbers<[1], [0], [0], [1], [0, 0, 1, 1], [], []>} : vector<16x256xbf16>, vector<256x512xbf16>, vector<16x512xf32> -> vector<16x512xf32>
    %cst_3 = arith.constant dense<0.000000e+00> : vector<512xf32>
    %3 = vector.multi_reduction <add>, %2, %cst_3 [0] : vector<16x512xf32> to vector<512xf32>
    %4 = vector.shape_cast %3 : vector<512xf32> to vector<1x512xf32>
    %5 = arith.mulf %2, %2 : vector<16x512xf32>
    %cst_4 = arith.constant dense<0.000000e+00> : vector<512xf32>
    %6 = vector.multi_reduction <add>, %5, %cst_4 [0] : vector<16x512xf32> to vector<512xf32>
    %7 = vector.shape_cast %6 : vector<512xf32> to vector<1x512xf32>
    %c0_5 = arith.constant 0 : index
    %c0_6 = arith.constant 0 : index
    %8 = vector.load %arg3[%c0_5, %c0_6] : memref<1x512xf32, #tpu.memory_space<vmem>>, vector<1x512xf32>
    %c0_7 = arith.constant 0 : index
    %c0_8 = arith.constant 0 : index
    %9 = vector.load %arg4[%c0_7, %c0_8] : memref<1x512xf32, #tpu.memory_space<vmem>>, vector<1x512xf32>
    %cst_9 = arith.constant 6.250000e-02 : f32
    %10 = vector.broadcast %cst_9 : f32 to vector<1x512xf32>
    %11 = arith.mulf %4, %10 : vector<1x512xf32>
    %cst_10 = arith.constant 6.250000e-02 : f32
    %12 = vector.broadcast %cst_10 : f32 to vector<1x512xf32>
    %13 = arith.mulf %7, %12 : vector<1x512xf32>
    %14 = arith.mulf %11, %11 : vector<1x512xf32>
    %15 = arith.subf %13, %14 : vector<1x512xf32>
    %cst_11 = arith.constant 9.99999974E-6 : f32
    %16 = vector.broadcast %cst_11 : f32 to vector<1x512xf32>
    %17 = arith.addf %15, %16 : vector<1x512xf32>
    %18 = math.rsqrt %17 : vector<1x512xf32>
    %19 = arith.mulf %18, %8 : vector<1x512xf32>
    %20 = arith.mulf %11, %19 : vector<1x512xf32>
    %21 = arith.subf %9, %20 : vector<1x512xf32>
    %c0_12 = arith.constant 0 : index
    %c0_13 = arith.constant 0 : index
    %22 = vector.load %arg5[%c0_12, %c0_13] : memref<512x128xbf16, #tpu.memory_space<vmem>>, vector<512x128xbf16>
    %c0_14 = arith.constant 0 : index
    %c0_15 = arith.constant 0 : index
    %23 = vector.load %arg6[%c0_14, %c0_15] : memref<1x128xf32, #tpu.memory_space<vmem>>, vector<1x128xf32>
    %24 = vector.broadcast %19 : vector<1x512xf32> to vector<16x512xf32>
    %25 = arith.mulf %2, %24 : vector<16x512xf32>
    %26 = vector.broadcast %21 : vector<1x512xf32> to vector<16x512xf32>
    %27 = arith.addf %25, %26 : vector<16x512xf32>
    %cst_16 = arith.constant 0.000000e+00 : f32
    %28 = vector.broadcast %cst_16 : f32 to vector<16x512xf32>
    %29 = arith.maximumf %27, %28 : vector<16x512xf32>
    %30 = arith.truncf %29 : vector<16x512xf32> to vector<16x512xbf16>
    %cst_17 = arith.constant dense<0.000000e+00> : vector<16x128xf32>
    %31 = tpu.matmul %30, %22, %cst_17 {dimension_numbers = #tpu.dot_dimension_numbers<[1], [0], [0], [1], [0, 0, 1, 1], [], []>} : vector<16x512xbf16>, vector<512x128xbf16>, vector<16x128xf32> -> vector<16x128xf32>
    %32 = vector.broadcast %23 : vector<1x128xf32> to vector<16x128xf32>
    %33 = arith.addf %31, %32 : vector<16x128xf32>
    %cst_18 = arith.constant dense<0xFF800000> : vector<16xf32>
    %34 = vector.multi_reduction <maximumf>, %33, %cst_18 [1] : vector<16x128xf32> to vector<16xf32>
    %35 = vector.shape_cast %34 : vector<16xf32> to vector<16x1xf32>
    %36 = vector.broadcast %35 : vector<16x1xf32> to vector<16x128xf32>
    %37 = arith.subf %33, %36 : vector<16x128xf32>
    %38 = math.exp %37 : vector<16x128xf32>
    %cst_19 = arith.constant dense<0.000000e+00> : vector<16xf32>
    %39 = vector.multi_reduction <add>, %38, %cst_19 [1] : vector<16x128xf32> to vector<16xf32>
    %40 = vector.shape_cast %39 : vector<16xf32> to vector<16x1xf32>
    %41 = math.log %40 : vector<16x1xf32>
    %42 = vector.broadcast %41 : vector<16x1xf32> to vector<16x128xf32>
    %43 = arith.subf %37, %42 : vector<16x128xf32>
    %c0_20 = arith.constant 0 : index
    %c0_21 = arith.constant 0 : index
    %44 = vector.load %arg7[%c0_20, %c0_21] : memref<16x128xf32, #tpu.memory_space<vmem>>, vector<16x128xf32>
    tpu.vector_store %arg7[%c0_20, %c0_21], %43 {strides = array<i32>} : memref<16x128xf32, #tpu.memory_space<vmem>>, vector<16x128xf32>,
    return
  }
  func.func @transform_0(%arg0: i32) -> (i32, i32) {
    %c0_i32 = arith.constant 0 : i32
    %c0_i32_0 = arith.constant 0 : i32
    %c0_i32_1 = arith.constant 0 : i32
    return %c0_i32, %c0_i32_0 : i32, i32
  }
  func.func @transform_1(%arg0: i32) -> (i32, i32) {
    %c0_i32 = arith.constant 0 : i32
    %c0_i32_0 = arith.constant 0 : i32
    %c0_i32_1 = arith.constant 0 : i32
    return %c0_i32, %c0_i32_0 : i32, i32
  }
  func.func @transform_2(%arg0: i32) -> (i32, i32) {
    %c0_i32 = arith.constant 0 : i32
    %c0_i32_0 = arith.constant 0 : i32
    %c0_i32_1 = arith.constant 0 : i32
    return %c0_i32, %c0_i32_0 : i32, i32
  }
  func.func @transform_3(%arg0: i32) -> (i32, i32) {
    %c0_i32 = arith.constant 0 : i32
    %c0_i32_0 = arith.constant 0 : i32
    %c0_i32_1 = arith.constant 0 : i32
    return %c0_i32, %c0_i32_0 : i32, i32
  }
  func.func @transform_4(%arg0: i32) -> (i32, i32) {
    %c0_i32 = arith.constant 0 : i32
    %c0_i32_0 = arith.constant 0 : i32
    %c0_i32_1 = arith.constant 0 : i32
    return %c0_i32, %c0_i32_0 : i32, i32
  }
  func.func @transform_5(%arg0: i32) -> (i32, i32) {
    %c0_i32 = arith.constant 0 : i32
    %c0_i32_0 = arith.constant 0 : i32
    %c0_i32_1 = arith.constant 0 : i32
    return %c0_i32, %c0_i32_0 : i32, i32
  }
  func.func @transform_6(%arg0: i32) -> (i32, i32) {
    %c0_i32 = arith.constant 0 : i32
    %c0_i32_0 = arith.constant 0 : i32
    %c0_i32_1 = arith.constant 0 : i32
    return %c0_i32, %c0_i32_0 : i32, i32
  }
}

</mosaic_0001>

<llo_original>
// kernel: tpu_custom_call.1
$region0: #{tpu_custom_call.1}
  #allocation0 [shape = 'u32[]', space=smem, size = 0x4, offset = 0x4, fixed_abs, tag = 'smem constant byte address 0x4 - core index']
  #allocation1 [shape = 'u32[144,128]{1,0:T(1,128)}', space=vmem, size = 0x12000, scoped, tag = 'internal scratch']
  %s0 = inlined_call_operand.hbm [shape: bf16[16,256], index: 0, kind: input, shape index: {}]
  %s1 = inlined_call_operand.hbm [shape: bf16[256,512], index: 1, kind: input, shape index: {}]
  %s2 = inlined_call_operand.vmem [shape: f32[1,512], index: 2, kind: input, shape index: {}]
  %s3 = inlined_call_operand.vmem [shape: f32[1,512], index: 3, kind: input, shape index: {}]
  %s4 = inlined_call_operand.hbm [shape: bf16[512,128], index: 4, kind: input, shape index: {}]
  %s5 = inlined_call_operand.vmem [shape: f32[1,128], index: 5, kind: input, shape index: {}]
  %s6 = inlined_call_operand.hbm [shape: f32[16,128], index: 6, kind: output, shape index: {}]
  %s7 = sld [smem:[#allocation0]]
  $region46: #{tpu_custom_call.1} parent=0
    _
  %s9 = ssub.s32 1, %s7
  %s10 = scalar_select 0, %s9, %s7
  $region1: #{tpu_custom_call.1} parent=0
    #allocation2 [shape = 'u8[8192]{0}', space=vmem, size = 0x2000, scoped, tag = 'input window, operand 0, single buffered']
    #allocation3 [shape = 's32[1]{0}', space=sflag, size = 0x4, scoped, tag = 'scoped memory for tpu_custom_call.1']
    #allocation4 [shape = 's32[1]{0}', space=sflag, size = 0x4, scoped, tag = 'scoped memory for tpu_custom_call.1']
    #allocation5 [shape = 'u8[262144]{0}', space=vmem, size = 0x40000, scoped, tag = 'input window, operand 1, single buffered']
    #allocation6 [shape = 's32[1]{0}', space=sflag, size = 0x4, scoped, tag = 'scoped memory for tpu_custom_call.1']
    #allocation7 [shape = 'u8[131072]{0}', space=vmem, size = 0x20000, scoped, tag = 'input window, operand 4, single buffered']
    #allocation8 [shape = 'u8[8192]{0}', space=vmem, size = 0x2000, scoped, tag = 'output window, operand 0, single buffered']
    %11 = vsyncpa [#allocation3], 0
    %12 = vsyncpa [#allocation6], 0
    %13 = vsyncpa [#allocation4], 0
    // Predicated region
    $region2: #{tpu_custom_call.1} parent=1 // pred_check
      _
    $region3: #{tpu_custom_call.1} parent=1 // pred_check_branch
      %15 = sbr.rel (0) target = $region5
    $region4: #{tpu_custom_call.1} parent=1 // pred_region
      %s17 = ssub.s32 256, 256
      %18 = vsyncadd [#allocation3], %s17
      %s19 = sshll.u32 [#allocation2], 4
      %s20 = int_to_ptr.vmem [resolvable:$true] %s19
      %25 = dma.hbm_to_vmem [thread:$0]  %s0, 256, %s20, [#allocation3], 128, 128, 8
    $region5: #{tpu_custom_call.1} parent=1 // pred_fallthru
      _
    // Predicated region
    $region6: #{tpu_custom_call.1} parent=1 // pred_check
      _
    $region7: #{tpu_custom_call.1} parent=1 // pred_check_branch
      %27 = sbr.rel (0) target = $region9
    $region8: #{tpu_custom_call.1} parent=1 // pred_region
      %s29 = ssub.s32 8192, 8192
      %30 = vsyncadd [#allocation6], %s29
      %s31 = sshll.u32 [#allocation5], 4
      %s32 = int_to_ptr.vmem [resolvable:$true] %s31
      %37 = dma.hbm_to_vmem [thread:$0]  %s1, 8192, %s32, [#allocation6], 256, 256, 16
    $region9: #{tpu_custom_call.1} parent=1 // pred_fallthru
      _
    // Predicated region
    $region10: #{tpu_custom_call.1} parent=1 // pred_check
      _
    $region11: #{tpu_custom_call.1} parent=1 // pred_check_branch
      %39 = sbr.rel (0) target = $region13
    $region12: #{tpu_custom_call.1} parent=1 // pred_region
      _
    $region13: #{tpu_custom_call.1} parent=1 // pred_fallthru
      _
    // Predicated region
    $region14: #{tpu_custom_call.1} parent=1 // pred_check
      _
    $region15: #{tpu_custom_call.1} parent=1 // pred_check_branch
      %41 = sbr.rel (0) target = $region17
    $region16: #{tpu_custom_call.1} parent=1 // pred_region
      _
    $region17: #{tpu_custom_call.1} parent=1 // pred_fallthru
      _
    // Predicated region
    $region18: #{tpu_custom_call.1} parent=1 // pred_check
      _
    $region19: #{tpu_custom_call.1} parent=1 // pred_check_branch
      %43 = sbr.rel (0) target = $region21
    $region20: #{tpu_custom_call.1} parent=1 // pred_region
      %s45 = ssub.s32 4096, 4096
      %46 = vsyncadd [#allocation6], %s45
      %s47 = sshll.u32 [#allocation7], 4
      %s48 = int_to_ptr.vmem [resolvable:$true] %s47
      %53 = dma.hbm_to_vmem [thread:$0]  %s4, 4096, %s48, [#allocation6], 64, 64, 4
    $region21: #{tpu_custom_call.1} parent=1 // pred_fallthru
      _
    // Predicated region
    $region22: #{tpu_custom_call.1} parent=1 // pred_check
      _
    $region23: #{tpu_custom_call.1} parent=1 // pred_check_branch
      %55 = sbr.rel (0) target = $region25
    $region24: #{tpu_custom_call.1} parent=1 // pred_region
      _
    $region25: #{tpu_custom_call.1} parent=1 // pred_fallthru
      _
    // Predicated region
    $region26: #{tpu_custom_call.1} parent=1 // pred_check
      _
    $region27: #{tpu_custom_call.1} parent=1 // pred_check_branch
      %57 = sbr.rel (0) target = $region29
    $region28: #{tpu_custom_call.1} parent=1 // pred_region
      %58 = dma.done [#allocation3], 256
    $region29: #{tpu_custom_call.1} parent=1 // pred_fallthru
      _
    // Predicated region
    $region30: #{tpu_custom_call.1} parent=1 // pred_check
      _
    $region31: #{tpu_custom_call.1} parent=1 // pred_check_branch
      %60 = sbr.rel (0) target = $region33
    $region32: #{tpu_custom_call.1} parent=1 // pred_region
      %61 = dma.done [#allocation6], 8192
    $region33: #{tpu_custom_call.1} parent=1 // pred_fallthru
      _
    // Predicated region
    $region34: #{tpu_custom_call.1} parent=1 // pred_check
      _
    $region35: #{tpu_custom_call.1} parent=1 // pred_check_branch
      %63 = sbr.rel (0) target = $region37
    $region36: #{tpu_custom_call.1} parent=1 // pred_region
      %64 = dma.done [#allocation6], 4096
    $region37: #{tpu_custom_call.1} parent=1 // pred_fallthru
      _
    %v66 = vld [vmem:[#allocation2] sm:$0xff]
    %v67 = vld [vmem:[#allocation2 + $0x8] sm:$0xff]
    %v68 = vld [vmem:[#allocation5] sm:$0xff]
    %v69 = vld [vmem:[#allocation5 + $0x8] sm:$0xff]
    %v70 = vld [vmem:[#allocation5 + $0x10] sm:$0xff]
    %v71 = vld [vmem:[#allocation5 + $0x18] sm:$0xff]
    %v72 = vld [vmem:[#allocation5 + $0x20] sm:$0xff]
    %v73 = vld [vmem:[#allocation5 + $0x28] sm:$0xff]
    %v74 = vld [vmem:[#allocation5 + $0x30] sm:$0xff]
    %v75 = vld [vmem:[#allocation5 + $0x38] sm:$0xff]
    %v76 = vld [vmem:[#allocation5 + $0x40] sm:$0xff]
    %v77 = vld [vmem:[#allocation5 + $0x48] sm:$0xff]
    %v78 = vld [vmem:[#allocation5 + $0x50] sm:$0xff]
    %v79 = vld [vmem:[#allocation5 + $0x58] sm:$0xff]
    %v80 = vld [vmem:[#allocation5 + $0x60] sm:$0xff]
    %v81 = vld [vmem:[#allocation5 + $0x68] sm:$0xff]
    %v82 = vld [vmem:[#allocation5 + $0x70] sm:$0xff]
    %v83 = vld [vmem:[#allocation5 + $0x78] sm:$0xff]
    %v84 = vld [vmem:[#allocation5 + $0x80] sm:$0xff]
    %v85 = vld [vmem:[#allocation5 + $0x88] sm:$0xff]
    %v86 = vld [vmem:[#allocation5 + $0x90] sm:$0xff]
    %v87 = vld [vmem:[#allocation5 + $0x98] sm:$0xff]
    %v88 = vld [vmem:[#allocation5 + $0xa0] sm:$0xff]
    %v89 = vld [vmem:[#allocation5 + $0xa8] sm:$0xff]
    %v90 = vld [vmem:[#allocation5 + $0xb0] sm:$0xff]
    %v91 = vld [vmem:[#allocation5 + $0xb8] sm:$0xff]
    %v92 = vld [vmem:[#allocation5 + $0xc0] sm:$0xff]
    %v93 = vld [vmem:[#allocation5 + $0xc8] sm:$0xff]
    %v94 = vld [vmem:[#allocation5 + $0xd0] sm:$0xff]
    %v95 = vld [vmem:[#allocation5 + $0xd8] sm:$0xff]
    %v96 = vld [vmem:[#allocation5 + $0xe0] sm:$0xff]
    %v97 = vld [vmem:[#allocation5 + $0xe8] sm:$0xff]
    %v98 = vld [vmem:[#allocation5 + $0xf0] sm:$0xff]
    %v99 = vld [vmem:[#allocation5 + $0xf8] sm:$0xff]
    %v100 = vld [vmem:[#allocation5 + $0x100] sm:$0xff]
    %v101 = vld [vmem:[#allocation5 + $0x108] sm:$0xff]
    %v102 = vld [vmem:[#allocation5 + $0x110] sm:$0xff]
    %v103 = vld [vmem:[#allocation5 + $0x118] sm:$0xff]
    %v104 = vld [vmem:[#allocation5 + $0x120] sm:$0xff]
    %v105 = vld [vmem:[#allocation5 + $0x128] sm:$0xff]
    %v106 = vld [vmem:[#allocation5 + $0x130] sm:$0xff]
    %v107 = vld [vmem:[#allocation5 + $0x138] sm:$0xff]
    %v108 = vld [vmem:[#allocation5 + $0x140] sm:$0xff]
    %v109 = vld [vmem:[#allocation5 + $0x148] sm:$0xff]
    %v110 = vld [vmem:[#allocation5 + $0x150] sm:$0xff]
    %v111 = vld [vmem:[#allocation5 + $0x158] sm:$0xff]
    %v112 = vld [vmem:[#allocation5 + $0x160] sm:$0xff]
    %v113 = vld [vmem:[#allocation5 + $0x168] sm:$0xff]
    %v114 = vld [vmem:[#allocation5 + $0x170] sm:$0xff]
    %v115 = vld [vmem:[#allocation5 + $0x178] sm:$0xff]
    %v116 = vld [vmem:[#allocation5 + $0x180] sm:$0xff]
    %v117 = vld [vmem:[#allocation5 + $0x188] sm:$0xff]
    %v118 = vld [vmem:[#allocation5 + $0x190] sm:$0xff]
    %v119 = vld [vmem:[#allocation5 + $0x198] sm:$0xff]
    %v120 = vld [vmem:[#allocation5 + $0x1a0] sm:$0xff]
    %v121 = vld [vmem:[#allocation5 + $0x1a8] sm:$0xff]
    %v122 = vld [vmem:[#allocation5 + $0x1b0] sm:$0xff]
    %v123 = vld [vmem:[#allocation5 + $0x1b8] sm:$0xff]
    %v124 = vld [vmem:[#allocation5 + $0x1c0] sm:$0xff]
    %v125 = vld [vmem:[#allocation5 + $0x1c8] sm:$0xff]
    %v126 = vld [vmem:[#allocation5 + $0x1d0] sm:$0xff]
    %v127 = vld [vmem:[#allocation5 + $0x1d8] sm:$0xff]
    %v128 = vld [vmem:[#allocation5 + $0x1e0] sm:$0xff]
    %v129 = vld [vmem:[#allocation5 + $0x1e8] sm:$0xff]
    %v130 = vld [vmem:[#allocation5 + $0x1f0] sm:$0xff]
    %v131 = vld [vmem:[#allocation5 + $0x1f8] sm:$0xff]
    %v134 = vunpack.c.l.b16 %v66
    %v135 = vunpack.c.h.b16 %v66
    %v136 = vunpack.c.l.b16 %v67
    %v137 = vunpack.c.h.b16 %v67
    %v138 = vpack.c.b16 %v136, %v134
    %v139 = vpack.c.b16 %v137, %v135
    %v206 = vunpack.c.l.b16 %v68
    %v207 = vunpack.c.h.b16 %v68
    %v208 = vunpack.c.l.b16 %v69
    %v209 = vunpack.c.h.b16 %v69
    %v210 = vunpack.c.l.b16 %v70
    %v211 = vunpack.c.h.b16 %v70
    %v212 = vunpack.c.l.b16 %v71
    %v213 = vunpack.c.h.b16 %v71
    %v214 = vunpack.c.l.b16 %v72
    %v215 = vunpack.c.h.b16 %v72
    %v216 = vunpack.c.l.b16 %v73
    %v217 = vunpack.c.h.b16 %v73
    %v218 = vunpack.c.l.b16 %v74
    %v219 = vunpack.c.h.b16 %v74
    %v220 = vunpack.c.l.b16 %v75
    %v221 = vunpack.c.h.b16 %v75
    %v222 = vunpack.c.l.b16 %v76
    %v223 = vunpack.c.h.b16 %v76
    %v224 = vunpack.c.l.b16 %v77
    %v225 = vunpack.c.h.b16 %v77
    %v226 = vunpack.c.l.b16 %v78
    %v227 = vunpack.c.h.b16 %v78
    %v228 = vunpack.c.l.b16 %v79
    %v229 = vunpack.c.h.b16 %v79
    %v230 = vunpack.c.l.b16 %v80
    %v231 = vunpack.c.h.b16 %v80
    %v232 = vunpack.c.l.b16 %v81
    %v233 = vunpack.c.h.b16 %v81
    %v234 = vunpack.c.l.b16 %v82
    %v235 = vunpack.c.h.b16 %v82
    %v236 = vunpack.c.l.b16 %v83
    %v237 = vunpack.c.h.b16 %v83
    %v238 = vunpack.c.l.b16 %v84
    %v239 = vunpack.c.h.b16 %v84
    %v240 = vunpack.c.l.b16 %v85
    %v241 = vunpack.c.h.b16 %v85
    %v242 = vunpack.c.l.b16 %v86
    %v243 = vunpack.c.h.b16 %v86
    %v244 = vunpack.c.l.b16 %v87
    %v245 = vunpack.c.h.b16 %v87
    %v246 = vunpack.c.l.b16 %v88
    %v247 = vunpack.c.h.b16 %v88
    %v248 = vunpack.c.l.b16 %v89
    %v249 = vunpack.c.h.b16 %v89
    %v250 = vunpack.c.l.b16 %v90
    %v251 = vunpack.c.h.b16 %v90
    %v252 = vunpack.c.l.b16 %v91
    %v253 = vunpack.c.h.b16 %v91
    %v254 = vunpack.c.l.b16 %v92
    %v255 = vunpack.c.h.b16 %v92
    %v256 = vunpack.c.l.b16 %v93
    %v257 = vunpack.c.h.b16 %v93
    %v258 = vunpack.c.l.b16 %v94
    %v259 = vunpack.c.h.b16 %v94
    %v260 = vunpack.c.l.b16 %v95
    %v261 = vunpack.c.h.b16 %v95
    %v262 = vunpack.c.l.b16 %v96
    %v263 = vunpack.c.h.b16 %v96
    %v264 = vunpack.c.l.b16 %v97
    %v265 = vunpack.c.h.b16 %v97
    %v266 = vunpack.c.l.b16 %v98
    %v267 = vunpack.c.h.b16 %v98
    %v268 = vunpack.c.l.b16 %v99
    %v269 = vunpack.c.h.b16 %v99
    %v270 = vunpack.c.l.b16 %v100
    %v271 = vunpack.c.h.b16 %v100
    %v272 = vunpack.c.l.b16 %v101
    %v273 = vunpack.c.h.b16 %v101
    %v274 = vunpack.c.l.b16 %v102
    %v275 = vunpack.c.h.b16 %v102
    %v276 = vunpack.c.l.b16 %v103
    %v277 = vunpack.c.h.b16 %v103
    %v278 = vunpack.c.l.b16 %v104
    %v279 = vunpack.c.h.b16 %v104
    %v280 = vunpack.c.l.b16 %v105
    %v281 = vunpack.c.h.b16 %v105
    %v282 = vunpack.c.l.b16 %v106
    %v283 = vunpack.c.h.b16 %v106
    %v284 = vunpack.c.l.b16 %v107
    %v285 = vunpack.c.h.b16 %v107
    %v286 = vunpack.c.l.b16 %v108
    %v287 = vunpack.c.h.b16 %v108
    %v288 = vunpack.c.l.b16 %v109
    %v289 = vunpack.c.h.b16 %v109
    %v290 = vunpack.c.l.b16 %v110
    %v291 = vunpack.c.h.b16 %v110
    %v292 = vunpack.c.l.b16 %v111
    %v293 = vunpack.c.h.b16 %v111
    %v294 = vunpack.c.l.b16 %v112
    %v295 = vunpack.c.h.b16 %v112
    %v296 = vunpack.c.l.b16 %v113
    %v297 = vunpack.c.h.b16 %v113
    %v298 = vunpack.c.l.b16 %v114
    %v299 = vunpack.c.h.b16 %v114
    %v300 = vunpack.c.l.b16 %v115
    %v301 = vunpack.c.h.b16 %v115
    %v302 = vunpack.c.l.b16 %v116
    %v303 = vunpack.c.h.b16 %v116
    %v304 = vunpack.c.l.b16 %v117
    %v305 = vunpack.c.h.b16 %v117
    %v306 = vunpack.c.l.b16 %v118
    %v307 = vunpack.c.h.b16 %v118
    %v308 = vunpack.c.l.b16 %v119
    %v309 = vunpack.c.h.b16 %v119
    %v310 = vunpack.c.l.b16 %v120
    %v311 = vunpack.c.h.b16 %v120
    %v312 = vunpack.c.l.b16 %v121
    %v313 = vunpack.c.h.b16 %v121
    %v314 = vunpack.c.l.b16 %v122
    %v315 = vunpack.c.h.b16 %v122
    %v316 = vunpack.c.l.b16 %v123
    %v317 = vunpack.c.h.b16 %v123
    %v318 = vunpack.c.l.b16 %v124
    %v319 = vunpack.c.h.b16 %v124
    %v320 = vunpack.c.l.b16 %v125
    %v321 = vunpack.c.h.b16 %v125
    %v322 = vunpack.c.l.b16 %v126
    %v323 = vunpack.c.h.b16 %v126
    %v324 = vunpack.c.l.b16 %v127
    %v325 = vunpack.c.h.b16 %v127
    %v326 = vunpack.c.l.b16 %v128
    %v327 = vunpack.c.h.b16 %v128
    %v328 = vunpack.c.l.b16 %v129
    %v329 = vunpack.c.h.b16 %v129
    %v330 = vunpack.c.l.b16 %v130
    %v331 = vunpack.c.h.b16 %v130
    %v332 = vunpack.c.l.b16 %v131
    %v333 = vunpack.c.h.b16 %v131
    %v334 = vpack.c.b16 %v210, %v206
    %v335 = vpack.c.b16 %v211, %v207
    %v336 = vpack.c.b16 %v212, %v208
    %v337 = vpack.c.b16 %v213, %v209
    %v338 = vpack.c.b16 %v218, %v214
    %v339 = vpack.c.b16 %v219, %v215
    %v340 = vpack.c.b16 %v220, %v216
    %v341 = vpack.c.b16 %v221, %v217
    %v342 = vpack.c.b16 %v226, %v222
    %v343 = vpack.c.b16 %v227, %v223
    %v344 = vpack.c.b16 %v228, %v224
    %v345 = vpack.c.b16 %v229, %v225
    %v346 = vpack.c.b16 %v234, %v230
    %v347 = vpack.c.b16 %v235, %v231
    %v348 = vpack.c.b16 %v236, %v232
    %v349 = vpack.c.b16 %v237, %v233
    %v350 = vpack.c.b16 %v242, %v238
    %v351 = vpack.c.b16 %v243, %v239
    %v352 = vpack.c.b16 %v244, %v240
    %v353 = vpack.c.b16 %v245, %v241
    %v354 = vpack.c.b16 %v250, %v246
    %v355 = vpack.c.b16 %v251, %v247
    %v356 = vpack.c.b16 %v252, %v248
    %v357 = vpack.c.b16 %v253, %v249
    %v358 = vpack.c.b16 %v258, %v254
    %v359 = vpack.c.b16 %v259, %v255
    %v360 = vpack.c.b16 %v260, %v256
    %v361 = vpack.c.b16 %v261, %v257
    %v362 = vpack.c.b16 %v266, %v262
    %v363 = vpack.c.b16 %v267, %v263
    %v364 = vpack.c.b16 %v268, %v264
    %v365 = vpack.c.b16 %v269, %v265
    %v366 = vpack.c.b16 %v274, %v270
    %v367 = vpack.c.b16 %v275, %v271
    %v368 = vpack.c.b16 %v276, %v272
    %v369 = vpack.c.b16 %v277, %v273
    %v370 = vpack.c.b16 %v282, %v278
    %v371 = vpack.c.b16 %v283, %v279
    %v372 = vpack.c.b16 %v284, %v280
    %v373 = vpack.c.b16 %v285, %v281
    %v374 = vpack.c.b16 %v290, %v286
    %v375 = vpack.c.b16 %v291, %v287
    %v376 = vpack.c.b16 %v292, %v288
    %v377 = vpack.c.b16 %v293, %v289
    %v378 = vpack.c.b16 %v298, %v294
    %v379 = vpack.c.b16 %v299, %v295
    %v380 = vpack.c.b16 %v300, %v296
    %v381 = vpack.c.b16 %v301, %v297
    %v382 = vpack.c.b16 %v306, %v302
    %v383 = vpack.c.b16 %v307, %v303
    %v384 = vpack.c.b16 %v308, %v304
    %v385 = vpack.c.b16 %v309, %v305
    %v386 = vpack.c.b16 %v314, %v310
    %v387 = vpack.c.b16 %v315, %v311
    %v388 = vpack.c.b16 %v316, %v312
    %v389 = vpack.c.b16 %v317, %v313
    %v390 = vpack.c.b16 %v322, %v318
    %v391 = vpack.c.b16 %v323, %v319
    %v392 = vpack.c.b16 %v324, %v320
    %v393 = vpack.c.b16 %v325, %v321
    %v394 = vpack.c.b16 %v330, %v326
    %v395 = vpack.c.b16 %v331, %v327
    %v396 = vpack.c.b16 %v332, %v328
    %v397 = vpack.c.b16 %v333, %v329
    %462 = vmatprep.subr.bf16.mxu0 %v335
    %463 = vmatpush1.bf16.msra.mxu0 %v334
    %464 = vmatprep.subr.bf16.mxu0 %v339
    %465 = vmatpush1.bf16.msra.mxu0 %v338
    %466 = vmatprep.subr.bf16.mxu0 %v343
    %467 = vmatpush1.bf16.msra.mxu0 %v342
    %468 = vmatprep.subr.bf16.mxu0 %v347
    %469 = vmatpush1.bf16.msra.mxu0 %v346
    %470 = vmatprep.subr.bf16.mxu0 %v351
    %471 = vmatpush1.bf16.msra.mxu0 %v350
    %472 = vmatprep.subr.bf16.mxu0 %v355
    %473 = vmatpush1.bf16.msra.mxu0 %v354
    %474 = vmatprep.subr.bf16.mxu0 %v359
    %475 = vmatpush1.bf16.msra.mxu0 %v358
    %476 = vmatprep.subr.bf16.mxu0 %v363
    %477 = vmatpush1.bf16.msra.mxu0 %v362
    %478 = vmatprep.subr.bf16.mxu0 %v367
    %479 = vmatpush1.bf16.msra.mxu0 %v366
    %480 = vmatprep.subr.bf16.mxu0 %v371
    %481 = vmatpush1.bf16.msra.mxu0 %v370
    %482 = vmatprep.subr.bf16.mxu0 %v375
    %483 = vmatpush1.bf16.msra.mxu0 %v374
    %484 = vmatprep.subr.bf16.mxu0 %v379
    %485 = vmatpush1.bf16.msra.mxu0 %v378
    %486 = vmatprep.subr.bf16.mxu0 %v383
    %487 = vmatpush1.bf16.msra.mxu0 %v382
    %488 = vmatprep.subr.bf16.mxu0 %v387
    %489 = vmatpush1.bf16.msra.mxu0 %v386
    %490 = vmatprep.subr.bf16.mxu0 %v391
    %491 = vmatpush1.bf16.msra.mxu0 %v390
    %492 = vmatprep.subr.bf16.mxu0 %v395
    %493 = vmatpush1.bf16.msra.mxu0 %v394
    %494 = vmatprep.mubr.bf16.mxu0 %v139
    %495 = vmatmul.mubr.bf16.gmra.mrb[0].mxu0 %v138
    %v496 = vpop.f32.mrb[0].mxu0
    %v497 = vadd.f32 0.0, %v496
    %v498 = vpop.f32.mrb[0].mxu0
    %v499 = vadd.f32 0.0, %v498
    %v500 = vpop.f32.mrb[0].mxu0
    %v501 = vadd.f32 0.0, %v500
    %v502 = vpop.f32.mrb[0].mxu0
    %v503 = vadd.f32 0.0, %v502
    %504 = vdwg.mxu0
    %505 = vmatprep.subr.bf16.mxu0 %v337
    %506 = vmatpush1.bf16.msra.mxu0 %v336
    %507 = vmatprep.subr.bf16.mxu0 %v341
    %508 = vmatpush1.bf16.msra.mxu0 %v340
    %509 = vmatprep.subr.bf16.mxu0 %v345
    %510 = vmatpush1.bf16.msra.mxu0 %v344
    %511 = vmatprep.subr.bf16.mxu0 %v349
    %512 = vmatpush1.bf16.msra.mxu0 %v348
    %513 = vmatprep.subr.bf16.mxu0 %v353
    %514 = vmatpush1.bf16.msra.mxu0 %v352
    %515 = vmatprep.subr.bf16.mxu0 %v357
    %516 = vmatpush1.bf16.msra.mxu0 %v356
    %517 = vmatprep.subr.bf16.mxu0 %v361
    %518 = vmatpush1.bf16.msra.mxu0 %v360
    %519 = vmatprep.subr.bf16.mxu0 %v365
    %520 = vmatpush1.bf16.msra.mxu0 %v364
    %521 = vmatprep.subr.bf16.mxu0 %v369
    %522 = vmatpush1.bf16.msra.mxu0 %v368
    %523 = vmatprep.subr.bf16.mxu0 %v373
    %524 = vmatpush1.bf16.msra.mxu0 %v372
    %525 = vmatprep.subr.bf16.mxu0 %v377
    %526 = vmatpush1.bf16.msra.mxu0 %v376
    %527 = vmatprep.subr.bf16.mxu0 %v381
    %528 = vmatpush1.bf16.msra.mxu0 %v380
    %529 = vmatprep.subr.bf16.mxu0 %v385
    %530 = vmatpush1.bf16.msra.mxu0 %v384
    %531 = vmatprep.subr.bf16.mxu0 %v389
    %532 = vmatpush1.bf16.msra.mxu0 %v388
    %533 = vmatprep.subr.bf16.mxu0 %v393
    %534 = vmatpush1.bf16.msra.mxu0 %v392
    %535 = vmatprep.subr.bf16.mxu0 %v397
    %536 = vmatpush1.bf16.msra.mxu0 %v396
    %537 = vmatprep.mubr.bf16.mxu0 %v139
    %538 = vmatmul.mubr.bf16.gmra.mrb[0].mxu0 %v138
    %v539 = vpop.f32.mrb[0].mxu0
    %v540 = vadd.f32 0.0, %v539
    %v541 = vpop.f32.mrb[0].mxu0
    %v542 = vadd.f32 0.0, %v541
    %v543 = vpop.f32.mrb[0].mxu0
    %v544 = vadd.f32 0.0, %v543
    %v545 = vpop.f32.mrb[0].mxu0
    %v546 = vadd.f32 0.0, %v545
    %547 = vdwg.mxu0
    %v548 = vadd.f32 %v497, %v501
    %v549 = vrot.slane %v548, 4
    %v550 = vadd.f32 %v548, %v549
    %v551 = vrot.slane %v550, 2
    %v552 = vadd.f32 %v550, %v551
    %v553 = vrot.slane %v552, 1
    %v554 = vadd.f32 %v552, %v553
    %v555 = vadd.f32 %v499, %v503
    %v556 = vrot.slane %v555, 4
    %v557 = vadd.f32 %v555, %v556
    %v558 = vrot.slane %v557, 2
    %v559 = vadd.f32 %v557, %v558
    %v560 = vrot.slane %v559, 1
    %v561 = vadd.f32 %v559, %v560
    %v562 = vadd.f32 %v540, %v544
    %v563 = vrot.slane %v562, 4
    %v564 = vadd.f32 %v562, %v563
    %v565 = vrot.slane %v564, 2
    %v566 = vadd.f32 %v564, %v565
    %v567 = vrot.slane %v566, 1
    %v568 = vadd.f32 %v566, %v567
    %v569 = vadd.f32 %v542, %v546
    %v570 = vrot.slane %v569, 4
    %v571 = vadd.f32 %v569, %v570
    %v572 = vrot.slane %v571, 2
    %v573 = vadd.f32 %v571, %v572
    %v574 = vrot.slane %v573, 1
    %v575 = vadd.f32 %v573, %v574
    %v576 = vmul.f32 %v497, %v497
    %v577 = vmul.f32 %v499, %v499
    %v578 = vmul.f32 %v540, %v540
    %v579 = vmul.f32 %v542, %v542
    %v580 = vmul.f32 %v501, %v501
    %v581 = vmul.f32 %v503, %v503
    %v582 = vmul.f32 %v544, %v544
    %v583 = vmul.f32 %v546, %v546
    %v584 = vadd.f32 %v576, %v580
    %v585 = vrot.slane %v584, 4
    %v586 = vadd.f32 %v584, %v585
    %v587 = vrot.slane %v586, 2
    %v588 = vadd.f32 %v586, %v587
    %v589 = vrot.slane %v588, 1
    %v590 = vadd.f32 %v588, %v589
    %v591 = vadd.f32 %v577, %v581
    %v592 = vrot.slane %v591, 4
    %v593 = vadd.f32 %v591, %v592
    %v594 = vrot.slane %v593, 2
    %v595 = vadd.f32 %v593, %v594
    %v596 = vrot.slane %v595, 1
    %v597 = vadd.f32 %v595, %v596
    %v598 = vadd.f32 %v578, %v582
    %v599 = vrot.slane %v598, 4
    %v600 = vadd.f32 %v598, %v599
    %v601 = vrot.slane %v600, 2
    %v602 = vadd.f32 %v600, %v601
    %v603 = vrot.slane %v602, 1
    %v604 = vadd.f32 %v602, %v603
    %v605 = vadd.f32 %v579, %v583
    %v606 = vrot.slane %v605, 4
    %v607 = vadd.f32 %v605, %v606
    %v608 = vrot.slane %v607, 2
    %v609 = vadd.f32 %v607, %v608
    %v610 = vrot.slane %v609, 1
    %v611 = vadd.f32 %v609, %v610
    %v612 = vld [vmem:[%s2] sm:$0xf]
    %v613 = vld [vmem:[%s3] sm:$0xf]
    %v614 = vmul.f32 %v554, 0.0625
    %v615 = vmul.f32 %v561, 0.0625
    %v616 = vmul.f32 %v568, 0.0625
    %v617 = vmul.f32 %v575, 0.0625
    %v618 = vmul.f32 %v590, 0.0625
    %v619 = vmul.f32 %v597, 0.0625
    %v620 = vmul.f32 %v604, 0.0625
    %v621 = vmul.f32 %v611, 0.0625
    %v622 = vmul.f32 %v614, %v614
    %v623 = vmul.f32 %v615, %v615
    %v624 = vmul.f32 %v616, %v616
    %v625 = vmul.f32 %v617, %v617
    %v626 = vsub.f32 %v618, %v622
    %v627 = vsub.f32 %v619, %v623
    %v628 = vsub.f32 %v620, %v624
    %v629 = vsub.f32 %v621, %v625
    %v630 = vadd.f32 %v626, 1e-05
    %v631 = vadd.f32 %v627, 1e-05
    %v632 = vadd.f32 %v628, 1e-05
    %v633 = vadd.f32 %v629, 1e-05
    %v634 = vrsqrt.pop %v630
    %v635 = vrsqrt.pop %v631
    %v636 = vrsqrt.pop %v632
    %v637 = vrsqrt.pop %v633
    %v639 = vlaneseq
    %v640 = vshrl.u32 %v639, 7
    %v641 = vsub.s32 0, %v640
    %v642 = vrot.slane %v612, %v641
    %v643 = vlaneseq
    %v644 = vshrl.u32 %v643, 7
    %v645 = vsub.s32 1, %v644
    %v646 = vrot.slane %v612, %v645
    %v647 = vlaneseq
    %v648 = vshrl.u32 %v647, 7
    %v649 = vsub.s32 2, %v648
    %v650 = vrot.slane %v612, %v649
    %v651 = vlaneseq
    %v652 = vshrl.u32 %v651, 7
    %v653 = vsub.s32 3, %v652
    %v654 = vrot.slane %v612, %v653
    %v659 = vmul.f32 %v634, %v642
    %v660 = vmul.f32 %v635, %v646
    %v661 = vmul.f32 %v636, %v650
    %v662 = vmul.f32 %v637, %v654
    %v663 = vmul.f32 %v614, %v659
    %v664 = vmul.f32 %v615, %v660
    %v665 = vmul.f32 %v616, %v661
    %v666 = vmul.f32 %v617, %v662
    %v671 = vcombine.low %v663, %v664
    %v672 = vcombine.low %v665, %v666
    %v674 = vunpack.c.l.s4 1966171168
    %v675 = vunpack.c.0.s8 %v674
    %v676 = vlaneseq
    %v677 = vshrl.u32 %v676, 7
    %v678 = vsub.s32 %v675, %v677
    %v679 = vrot.slane %v671, %v678
    %v681 = vunpack.c.l.s4 1966171168
    %v682 = vunpack.c.0.s8 %v681
    %v683 = vlaneseq
    %v684 = vshrl.u32 %v683, 7
    %v685 = vsub.s32 %v682, %v684
    %v686 = vrot.slane %v672, %v685
    %v687 = vcombine.low %v679, %v686
    %v689 = vunpack.c.l.s4 1966171168
    %v690 = vunpack.c.0.s8 %v689
    %v691 = vlaneseq
    %v692 = vshrl.u32 %v691, 7
    %v693 = vsub.s32 %v690, %v692
    %v694 = vrot.slane %v687, %v693
    %v696 = vsub.f32 %v613, %v694
    %v697 = vld [vmem:[#allocation7] sm:$0xf]
    %v698 = vld [vmem:[#allocation7 + $0x4] sm:$0xf]
    %v699 = vld [vmem:[#allocation7 + $0x8] sm:$0xf]
    %v700 = vld [vmem:[#allocation7 + $0xc] sm:$0xf]
    %v701 = vld [vmem:[#allocation7 + $0x10] sm:$0xf]
    %v702 = vld [vmem:[#allocation7 + $0x14] sm:$0xf]
    %v703 = vld [vmem:[#allocation7 + $0x18] sm:$0xf]
    %v704 = vld [vmem:[#allocation7 + $0x1c] sm:$0xf]
    %v705 = vld [vmem:[#allocation7 + $0x20] sm:$0xf]
    %v706 = vld [vmem:[#allocation7 + $0x24] sm:$0xf]
    %v707 = vld [vmem:[#allocation7 + $0x28] sm:$0xf]
    %v708 = vld [vmem:[#allocation7 + $0x2c] sm:$0xf]
    %v709 = vld [vmem:[#allocation7 + $0x30] sm:$0xf]
    %v710 = vld [vmem:[#allocation7 + $0x34] sm:$0xf]
    %v711 = vld [vmem:[#allocation7 + $0x38] sm:$0xf]
    %v712 = vld [vmem:[#allocation7 + $0x3c] sm:$0xf]
    %v713 = vld [vmem:[#allocation7 + $0x40] sm:$0xf]
    %v714 = vld [vmem:[#allocation7 + $0x44] sm:$0xf]
    %v715 = vld [vmem:[#allocation7 + $0x48] sm:$0xf]
    %v716 = vld [vmem:[#allocation7 + $0x4c] sm:$0xf]
    %v717 = vld [vmem:[#allocation7 + $0x50] sm:$0xf]
    %v718 = vld [vmem:[#allocation7 + $0x54] sm:$0xf]
    %v719 = vld [vmem:[#allocation7 + $0x58] sm:$0xf]
    %v720 = vld [vmem:[#allocation7 + $0x5c] sm:$0xf]
    %v721 = vld [vmem:[#allocation7 + $0x60] sm:$0xf]
    %v722 = vld [vmem:[#allocation7 + $0x64] sm:$0xf]
    %v723 = vld [vmem:[#allocation7 + $0x68] sm:$0xf]
    %v724 = vld [vmem:[#allocation7 + $0x6c] sm:$0xf]
    %v725 = vld [vmem:[#allocation7 + $0x70] sm:$0xf]
    %v726 = vld [vmem:[#allocation7 + $0x74] sm:$0xf]
    %v727 = vld [vmem:[#allocation7 + $0x78] sm:$0xf]
    %v728 = vld [vmem:[#allocation7 + $0x7c] sm:$0xf]
    %v729 = vld [vmem:[#allocation7 + $0x80] sm:$0xf]
    %v730 = vld [vmem:[#allocation7 + $0x84] sm:$0xf]
    %v731 = vld [vmem:[#allocation7 + $0x88] sm:$0xf]
    %v732 = vld [vmem:[#allocation7 + $0x8c] sm:$0xf]
    %v733 = vld [vmem:[#allocation7 + $0x90] sm:$0xf]
    %v734 = vld [vmem:[#allocation7 + $0x94] sm:$0xf]
    %v735 = vld [vmem:[#allocation7 + $0x98] sm:$0xf]
    %v736 = vld [vmem:[#allocation7 + $0x9c] sm:$0xf]
    %v737 = vld [vmem:[#allocation7 + $0xa0] sm:$0xf]
    %v738 = vld [vmem:[#allocation7 + $0xa4] sm:$0xf]
    %v739 = vld [vmem:[#allocation7 + $0xa8] sm:$0xf]
    %v740 = vld [vmem:[#allocation7 + $0xac] sm:$0xf]
    %v741 = vld [vmem:[#allocation7 + $0xb0] sm:$0xf]
    %v742 = vld [vmem:[#allocation7 + $0xb4] sm:$0xf]
    %v743 = vld [vmem:[#allocation7 + $0xb8] sm:$0xf]
    %v744 = vld [vmem:[#allocation7 + $0xbc] sm:$0xf]
    %v745 = vld [vmem:[#allocation7 + $0xc0] sm:$0xf]
    %v746 = vld [vmem:[#allocation7 + $0xc4] sm:$0xf]
    %v747 = vld [vmem:[#allocation7 + $0xc8] sm:$0xf]
    %v748 = vld [vmem:[#allocation7 + $0xcc] sm:$0xf]
    %v749 = vld [vmem:[#allocation7 + $0xd0] sm:$0xf]
    %v750 = vld [vmem:[#allocation7 + $0xd4] sm:$0xf]
    %v751 = vld [vmem:[#allocation7 + $0xd8] sm:$0xf]
    %v752 = vld [vmem:[#allocation7 + $0xdc] sm:$0xf]
    %v753 = vld [vmem:[#allocation7 + $0xe0] sm:$0xf]
    %v754 = vld [vmem:[#allocation7 + $0xe4] sm:$0xf]
    %v755 = vld [vmem:[#allocation7 + $0xe8] sm:$0xf]
    %v756 = vld [vmem:[#allocation7 + $0xec] sm:$0xf]
    %v757 = vld [vmem:[#allocation7 + $0xf0] sm:$0xf]
    %v758 = vld [vmem:[#allocation7 + $0xf4] sm:$0xf]
    %v759 = vld [vmem:[#allocation7 + $0xf8] sm:$0xf]
    %v760 = vld [vmem:[#allocation7 + $0xfc] sm:$0xf]
    %v761 = vld [vmem:[%s5] sm:$0x1]
    %v762 = vlaneseq
    %v763 = vshrl.u32 %v762, 7
    %v764 = vsub.s32 0, %v763
    %v765 = vrot.slane %v659, %v764
    %v766 = vlaneseq
    %v767 = vshrl.u32 %v766, 7
    %v768 = vsub.s32 0, %v767
    %v769 = vrot.slane %v660, %v768
    %v770 = vlaneseq
    %v771 = vshrl.u32 %v770, 7
    %v772 = vsub.s32 0, %v771
    %v773 = vrot.slane %v661, %v772
    %v774 = vlaneseq
    %v775 = vshrl.u32 %v774, 7
    %v776 = vsub.s32 0, %v775
    %v777 = vrot.slane %v662, %v776
    %v778 = vmul.f32 %v497, %v765
    %v779 = vmul.f32 %v499, %v769
    %v780 = vmul.f32 %v540, %v773
    %v781 = vmul.f32 %v542, %v777
    %v782 = vmul.f32 %v501, %v765
    %v783 = vmul.f32 %v503, %v769
    %v784 = vmul.f32 %v544, %v773
    %v785 = vmul.f32 %v546, %v777
    %v787 = vlaneseq
    %v788 = vshrl.u32 %v787, 7
    %v789 = vsub.s32 0, %v788
    %v790 = vrot.slane %v696, %v789
    %v791 = vlaneseq
    %v792 = vshrl.u32 %v791, 7
    %v793 = vsub.s32 1, %v792
    %v794 = vrot.slane %v696, %v793
    %v795 = vlaneseq
    %v796 = vshrl.u32 %v795, 7
    %v797 = vsub.s32 2, %v796
    %v798 = vrot.slane %v696, %v797
    %v799 = vlaneseq
    %v800 = vshrl.u32 %v799, 7
    %v801 = vsub.s32 3, %v800
    %v802 = vrot.slane %v696, %v801
    %v807 = vadd.f32 %v778, %v790
    %v808 = vadd.f32 %v779, %v794
    %v809 = vadd.f32 %v780, %v798
    %v810 = vadd.f32 %v781, %v802
    %v811 = vadd.f32 %v782, %v790
    %v812 = vadd.f32 %v783, %v794
    %v813 = vadd.f32 %v784, %v798
    %v814 = vadd.f32 %v785, %v802
    %v815 = vmax.f32 %v807, 0.0
    %v816 = vmax.f32 %v808, 0.0
    %v817 = vmax.f32 %v809, 0.0
    %v818 = vmax.f32 %v810, 0.0
    %v819 = vmax.f32 %v811, 0.0
    %v820 = vmax.f32 %v812, 0.0
    %v821 = vmax.f32 %v813, 0.0
    %v822 = vmax.f32 %v814, 0.0
    %v823 = vpack.c.bf16 %v819, %v815
    %v824 = vpack.c.bf16 %v820, %v816
    %v825 = vpack.c.bf16 %v821, %v817
    %v826 = vpack.c.bf16 %v822, %v818
    %v828 = vlaneseq
    %v829 = vshrl.u32 %v828, 7
    %v830 = vsub.s32 0, %v829
    %v831 = vrot.slane %v761, %v830
    %v897 = vunpack.c.l.b16 %v697
    %v898 = vunpack.c.l.b16 %v698
    %v899 = vunpack.c.l.b16 %v699
    %v900 = vunpack.c.l.b16 %v700
    %v901 = vunpack.c.l.b16 %v701
    %v902 = vunpack.c.l.b16 %v702
    %v903 = vunpack.c.l.b16 %v703
    %v904 = vunpack.c.l.b16 %v704
    %v905 = vunpack.c.l.b16 %v705
    %v906 = vunpack.c.l.b16 %v706
    %v907 = vunpack.c.l.b16 %v707
    %v908 = vunpack.c.l.b16 %v708
    %v909 = vunpack.c.l.b16 %v709
    %v910 = vunpack.c.l.b16 %v710
    %v911 = vunpack.c.l.b16 %v711
    %v912 = vunpack.c.l.b16 %v712
    %v913 = vunpack.c.l.b16 %v713
    %v914 = vunpack.c.l.b16 %v714
    %v915 = vunpack.c.l.b16 %v715
    %v916 = vunpack.c.l.b16 %v716
    %v917 = vunpack.c.l.b16 %v717
    %v918 = vunpack.c.l.b16 %v718
    %v919 = vunpack.c.l.b16 %v719
    %v920 = vunpack.c.l.b16 %v720
    %v921 = vunpack.c.l.b16 %v721
    %v922 = vunpack.c.l.b16 %v722
    %v923 = vunpack.c.l.b16 %v723
    %v924 = vunpack.c.l.b16 %v724
    %v925 = vunpack.c.l.b16 %v725
    %v926 = vunpack.c.l.b16 %v726
    %v927 = vunpack.c.l.b16 %v727
    %v928 = vunpack.c.l.b16 %v728
    %v929 = vunpack.c.l.b16 %v729
    %v930 = vunpack.c.l.b16 %v730
    %v931 = vunpack.c.l.b16 %v731
    %v932 = vunpack.c.l.b16 %v732
    %v933 = vunpack.c.l.b16 %v733
    %v934 = vunpack.c.l.b16 %v734
    %v935 = vunpack.c.l.b16 %v735
    %v936 = vunpack.c.l.b16 %v736
    %v937 = vunpack.c.l.b16 %v737
    %v938 = vunpack.c.l.b16 %v738
    %v939 = vunpack.c.l.b16 %v739
    %v940 = vunpack.c.l.b16 %v740
    %v941 = vunpack.c.l.b16 %v741
    %v942 = vunpack.c.l.b16 %v742
    %v943 = vunpack.c.l.b16 %v743
    %v944 = vunpack.c.l.b16 %v744
    %v945 = vunpack.c.l.b16 %v745
    %v946 = vunpack.c.l.b16 %v746
    %v947 = vunpack.c.l.b16 %v747
    %v948 = vunpack.c.l.b16 %v748
    %v949 = vunpack.c.l.b16 %v749
    %v950 = vunpack.c.l.b16 %v750
    %v951 = vunpack.c.l.b16 %v751
    %v952 = vunpack.c.l.b16 %v752
    %v953 = vunpack.c.l.b16 %v753
    %v954 = vunpack.c.l.b16 %v754
    %v955 = vunpack.c.l.b16 %v755
    %v956 = vunpack.c.l.b16 %v756
    %v957 = vunpack.c.l.b16 %v757
    %v958 = vunpack.c.l.b16 %v758
    %v959 = vunpack.c.l.b16 %v759
    %v960 = vunpack.c.l.b16 %v760
    %v961 = vpack.c.b16 %v898, %v897
    %v962 = vpack.c.b16 %v900, %v899
    %v963 = vpack.c.b16 %v902, %v901
    %v964 = vpack.c.b16 %v904, %v903
    %v965 = vpack.c.b16 %v906, %v905
    %v966 = vpack.c.b16 %v908, %v907
    %v967 = vpack.c.b16 %v910, %v909
    %v968 = vpack.c.b16 %v912, %v911
    %v969 = vpack.c.b16 %v914, %v913
    %v970 = vpack.c.b16 %v916, %v915
    %v971 = vpack.c.b16 %v918, %v917
    %v972 = vpack.c.b16 %v920, %v919
    %v973 = vpack.c.b16 %v922, %v921
    %v974 = vpack.c.b16 %v924, %v923
    %v975 = vpack.c.b16 %v926, %v925
    %v976 = vpack.c.b16 %v928, %v927
    %v977 = vpack.c.b16 %v930, %v929
    %v978 = vpack.c.b16 %v932, %v931
    %v979 = vpack.c.b16 %v934, %v933
    %v980 = vpack.c.b16 %v936, %v935
    %v981 = vpack.c.b16 %v938, %v937
    %v982 = vpack.c.b16 %v940, %v939
    %v983 = vpack.c.b16 %v942, %v941
    %v984 = vpack.c.b16 %v944, %v943
    %v985 = vpack.c.b16 %v946, %v945
    %v986 = vpack.c.b16 %v948, %v947
    %v987 = vpack.c.b16 %v950, %v949
    %v988 = vpack.c.b16 %v952, %v951
    %v989 = vpack.c.b16 %v954, %v953
    %v990 = vpack.c.b16 %v956, %v955
    %v991 = vpack.c.b16 %v958, %v957
    %v992 = vpack.c.b16 %v960, %v959
    %1025 = vmatprep.subr.bf16.mxu0 0
    %1026 = vmatpush1.bf16.msra.mxu0 %v961
    %1027 = vmatprep.subr.bf16.mxu0 0
    %1028 = vmatpush1.bf16.msra.mxu0 %v962
    %1029 = vmatprep.subr.bf16.mxu0 0
    %1030 = vmatpush1.bf16.msra.mxu0 %v963
    %1031 = vmatprep.subr.bf16.mxu0 0
    %1032 = vmatpush1.bf16.msra.mxu0 %v964
    %1033 = vmatprep.subr.bf16.mxu0 0
    %1034 = vmatpush1.bf16.msra.mxu0 %v965
    %1035 = vmatprep.subr.bf16.mxu0 0
    %1036 = vmatpush1.bf16.msra.mxu0 %v966
    %1037 = vmatprep.subr.bf16.mxu0 0
    %1038 = vmatpush1.bf16.msra.mxu0 %v967
    %1039 = vmatprep.subr.bf16.mxu0 0
    %1040 = vmatpush1.bf16.msra.mxu0 %v968
    %1041 = vmatprep.subr.bf16.mxu0 0
    %1042 = vmatpush1.bf16.msra.mxu0 %v969
    %1043 = vmatprep.subr.bf16.mxu0 0
    %1044 = vmatpush1.bf16.msra.mxu0 %v970
    %1045 = vmatprep.subr.bf16.mxu0 0
    %1046 = vmatpush1.bf16.msra.mxu0 %v971
    %1047 = vmatprep.subr.bf16.mxu0 0
    %1048 = vmatpush1.bf16.msra.mxu0 %v972
    %1049 = vmatprep.subr.bf16.mxu0 0
    %1050 = vmatpush1.bf16.msra.mxu0 %v973
    %1051 = vmatprep.subr.bf16.mxu0 0
    %1052 = vmatpush1.bf16.msra.mxu0 %v974
    %1053 = vmatprep.subr.bf16.mxu0 0
    %1054 = vmatpush1.bf16.msra.mxu0 %v975
    %1055 = vmatprep.subr.bf16.mxu0 0
    %1056 = vmatpush1.bf16.msra.mxu0 %v976
    %1057 = vmatprep.mubr.bf16.mxu0 %v824
    %1058 = vmatmul.mubr.bf16.gmra.mrb[0].mxu0 %v823
    %v1059 = vpop.f32.mrb[0].mxu0
    %v1060 = vadd.f32 %v831, %v1059
    %v1061 = vpop.f32.mrb[0].mxu0
    %v1062 = vpop.f32.mrb[0].mxu0
    %v1063 = vadd.f32 %v831, %v1062
    %v1064 = vpop.f32.mrb[0].mxu0
    %1065 = vdwg.mxu0
    %1066 = vmatprep.subr.bf16.mxu0 0
    %1067 = vmatpush1.bf16.msra.mxu0 %v977
    %1068 = vmatprep.subr.bf16.mxu0 0
    %1069 = vmatpush1.bf16.msra.mxu0 %v978
    %1070 = vmatprep.subr.bf16.mxu0 0
    %1071 = vmatpush1.bf16.msra.mxu0 %v979
    %1072 = vmatprep.subr.bf16.mxu0 0
    %1073 = vmatpush1.bf16.msra.mxu0 %v980
    %1074 = vmatprep.subr.bf16.mxu0 0
    %1075 = vmatpush1.bf16.msra.mxu0 %v981
    %1076 = vmatprep.subr.bf16.mxu0 0
    %1077 = vmatpush1.bf16.msra.mxu0 %v982
    %1078 = vmatprep.subr.bf16.mxu0 0
    %1079 = vmatpush1.bf16.msra.mxu0 %v983
    %1080 = vmatprep.subr.bf16.mxu0 0
    %1081 = vmatpush1.bf16.msra.mxu0 %v984
    %1082 = vmatprep.subr.bf16.mxu0 0
    %1083 = vmatpush1.bf16.msra.mxu0 %v985
    %1084 = vmatprep.subr.bf16.mxu0 0
    %1085 = vmatpush1.bf16.msra.mxu0 %v986
    %1086 = vmatprep.subr.bf16.mxu0 0
    %1087 = vmatpush1.bf16.msra.mxu0 %v987
    %1088 = vmatprep.subr.bf16.mxu0 0
    %1089 = vmatpush1.bf16.msra.mxu0 %v988
    %1090 = vmatprep.subr.bf16.mxu0 0
    %1091 = vmatpush1.bf16.msra.mxu0 %v989
    %1092 = vmatprep.subr.bf16.mxu0 0
    %1093 = vmatpush1.bf16.msra.mxu0 %v990
    %1094 = vmatprep.subr.bf16.mxu0 0
    %1095 = vmatpush1.bf16.msra.mxu0 %v991
    %1096 = vmatprep.subr.bf16.mxu0 0
    %1097 = vmatpush1.bf16.msra.mxu0 %v992
    %1098 = vmatprep.mubr.bf16.mxu0 %v826
    %1099 = vmatmul.mubr.bf16.gmra.mrb[0].mxu0 %v825
    %v1100 = vpop.f32.mrb[0].mxu0
    %v1101 = vadd.f32 %v1060, %v1100
    %v1102 = vpop.f32.mrb[0].mxu0
    %v1103 = vpop.f32.mrb[0].mxu0
    %v1104 = vadd.f32 %v1063, %v1103
    %v1105 = vpop.f32.mrb[0].mxu0
    %1106 = vdwg.mxu0
    %1107 = vmax.xlane.f32.xlu0 %v1101
    %v1108 = vpop.xlane.xlu0 %1107
    %1109 = vmax.xlane.f32.xlu0 %v1104
    %v1110 = vpop.xlane.xlu0 %1109
    %v1111 = vsub.f32 %v1101, %v1108
    %v1112 = vsub.f32 %v1104, %v1110
    %v1113 = vmul.f32 %v1111, 1.442695
    %v1114 = vpow.pop %v1113
    %v1115 = vmul.f32 %v1112, 1.442695
    %v1116 = vpow.pop %v1115
    %1117 = vadd.xlane.f32.xlu0 %v1114
    %v1118 = vpop.xlane.xlu0 %1117
    %1119 = vadd.xlane.f32.xlu0 %v1116
    %v1120 = vpop.xlane.xlu0 %1119
    %v1121 = vlog2.pop %v1118
    %v1122 = vmul.f32 %v1121, 0.6931472
    %v1123 = vlog2.pop %v1120
    %v1124 = vmul.f32 %v1123, 0.6931472
    %v1125 = vsub.f32 %v1111, %v1122
    %v1126 = vsub.f32 %v1112, %v1124
    %1127 = vst [vmem:[#allocation8] sm:$0xff] %v1125
    %1128 = vst [vmem:[#allocation8 + $0x8] sm:$0xff] %v1126
    // Predicated region
    $region38: #{tpu_custom_call.1} parent=1 // pred_check
      _
    $region39: #{tpu_custom_call.1} parent=1 // pred_check_branch
      %1130 = sbr.rel (0) target = $region41
    $region40: #{tpu_custom_call.1} parent=1 // pred_region
      %s1132 = ssub.s32 256, 256
      %1133 = vsyncadd [#allocation4], %s1132
      %s1134 = sshll.u32 [#allocation8], 4
      %s1135 = int_to_ptr.vmem [resolvable:$true] %s1134
      %1140 = dma.vmem_to_hbm [thread:$0]  %s1135, 256, %s6, [#allocation4], 128, 128, 8
    $region41: #{tpu_custom_call.1} parent=1 // pred_fallthru
      _
    // Predicated region
    $region42: #{tpu_custom_call.1} parent=1 // pred_check
      _
    $region43: #{tpu_custom_call.1} parent=1 // pred_check_branch
      %1142 = sbr.rel (0) target = $region45
    $region44: #{tpu_custom_call.1} parent=1 // pred_region
      %1143 = dma.done [#allocation4], 256
    $region45: #{tpu_custom_call.1} parent=1 // pred_fallthru
      _
    %1144 = vsyncpa [#allocation3], 1
    %1145 = vsyncpa [#allocation6], 1
    %1146 = vsyncpa [#allocation4], 1

</llo_original>
